<compile_context>
chip_gen: v6e
topology: v6e:2x2x1
jax: 0.10.0
libtpu: 0.0.40
codegen_flags: <defaults>
</compile_context>

<pallas_src>
import functools

import jax
import jax.numpy as jnp
from jax import lax
from jax.experimental import pallas as pl
from jax.experimental.pallas import tpu as pltpu

EPS = 1e-9


def _round_up(v, m):
  return ((v + m - 1) // m) * m


# --------------------------------------------------------------------------- #
# Pass 1: offset path -> clamped relative sample positions R (B, K, Lp_pad)
# --------------------------------------------------------------------------- #
def _offset_kernel(x_ref,        # (1, C, Lx_pad) zero-padded input, channels-first
                   dw_ref,       # (C, K)         depthwise offset-conv weight
                   odc_g_ref,    # (C, 1)         gLN gamma (after depthwise conv)
                   odc_b_ref,    # (C, 1)         gLN beta
                   pw_ref,       # (K, C)         pointwise offset-conv weight (og=1)
                   odp_g_ref,    # (K, 1)         gLN gamma (after pointwise conv)
                   odp_b_ref,    # (K, 1)         gLN beta + dilated positions (folded)
                   alphas_ref,   # (2,) SMEM      [odc_prelu_alpha, odp_prelu_alpha]
                   r_ref,        # (1, K, Lp_pad) output: clamped relative positions
                   *, kernel_size, dilation, valid_len):
  K = kernel_size
  x = x_ref[0]                          # (C, Lx_pad)
  Lp_pad = r_ref.shape[2]
  C = x.shape[0]

  # ---- offset_dconv: depthwise K-tap conv, 'valid', stride 1 (dilation 1 in module) ----
  dw = dw_ref[...]
  d = dw[:, 0:1] * x[:, 0:Lp_pad]
  for k in range(1, K):
    d = d + dw[:, k:k + 1] * x[:, k:k + Lp_pad]        # (C, Lp_pad)

  # ---- PReLU + gLN (global stats over the *valid* Lp columns only) ----
  a0 = alphas_ref[0]
  d = jnp.where(d >= 0, d, a0 * d)
  col = lax.broadcasted_iota(jnp.int32, (1, Lp_pad), 1)
  valid = col < valid_len                              # padded tail is garbage -> mask
  n = C * valid_len
  dm = jnp.where(valid, d, 0.0)
  mean = jnp.sum(dm) / n
  var = jnp.maximum(jnp.sum(dm * dm) / n - mean * mean, 0.0)   # clamp f32 cancellation
  inv = lax.rsqrt(var + EPS)                                   # EUP, no per-element divide
  d = (d - mean) * (odc_g_ref[...] * inv) + odc_b_ref[...]

  # ---- offset_pconv: 1x1 conv == single matmul over channels ----
  p = jnp.dot(pw_ref[...], d, preferred_element_type=jnp.float32)   # (K, Lp_pad)

  # ---- PReLU + gLN ----
  a1 = alphas_ref[1]
  p = jnp.where(p >= 0, p, a1 * p)
  n2 = p.shape[0] * valid_len
  pm = jnp.where(valid, p, 0.0)
  mean2 = jnp.sum(pm) / n2
  var2 = jnp.maximum(jnp.sum(pm * pm) / n2 - mean2 * mean2, 0.0)
  inv2 = lax.rsqrt(var2 + EPS)
  # odp_b already contains the dilated kernel positions dil*k (folded in the wrapper),
  # so p is directly T - t for every output position t (offset_groups == 1).
  p = (p - mean2) * (odp_g_ref[...] * inv2) + odp_b_ref[...]

  # Clamp to the constrained range [0, dil*(K-1)] (relative to each output position).
  r_ref[0] = jnp.clip(p, 0.0, float(dilation * (K - 1)))


# --------------------------------------------------------------------------- #
# Pass 2: banded linear interpolation + fused main conv (lane-dense output)
# --------------------------------------------------------------------------- #
def _deform_kernel(x_ref,        # (1, C, WIN)    halo window of the padded input
                   r_ref,        # (1, K, TILE)   clamped relative positions for this tile
                   w_ref,        # (O, KC_pad)    main weight, w[o, k*C + c] = weight[o,c,k]
                   bias_ref,     # (O, 1)         main conv bias (f32)
                   out_ref,      # (1, O, TILE)   output, channels-first (lane-dense)
                   stk_ref,      # (KC_pad, TILE) VMEM scratch, matmul dtype
                   *, kernel_size, dilation, tile):
  K = kernel_size
  span = dilation * (K - 1) + 1         # nonzero band width of the clamped hat weights
  C = x_ref.shape[1]
  KC = K * C

  # k outer / d inner: exactly ONE (C, TILE) f32 accumulator is live at a time; each
  # finished tap is parked into its row block of the VMEM scratch feeding the matmul.
  for k in range(K):
    rk = r_ref[0, k:k + 1, :]                                   # (1, TILE)
    acc = jnp.zeros((C, tile), jnp.float32)
    for d in range(span):
      xs = x_ref[0, :, d:d + tile]                              # (C, TILE) window slice
      hat = jnp.maximum(0.0, 1.0 - jnp.abs(float(d) - rk))      # (1, TILE) hat weight
      acc = acc + hat * xs
    stk_ref[k * C:(k + 1) * C, :] = acc.astype(stk_ref.dtype)

  pad_rows = stk_ref.shape[0] - KC
  if pad_rows > 0:                       # zero sublane-padding rows (tiny, every step:
    stk_ref[KC:, :] = jnp.zeros((pad_rows, tile), stk_ref.dtype)  # megacore-safe)

  # Single fused (O, K*C) x (K*C, TILE) MXU matmul + bias, lane-dense store.
  out = jnp.dot(w_ref[...], stk_ref[...], preferred_element_type=jnp.float32)  # (O, TILE)
  out_ref[0] = out + bias_ref[...]


def _pick_tile(C, Lp):
  """Largest lane tile in {512, 256, 128} whose single (C, tile) f32 accumulator stays
  within ~half the 256 KiB vreg file (perf feedback: sweep this range; 128 is the floor)."""
  del Lp
  for cand in (512, 256, 128):
    if C * cand * 4 <= 128 * 1024:
      return cand
  return 128


def _vmem_limit(est_bytes):
  """Explicit scoped-VMEM request: 2x headroom over the block/scratch estimate, floored
  at 32 MiB and capped at 64 MiB so it is valid on every chip (v7x has 64 MiB/TC)."""
  return int(min(64 * 2 ** 20, max(32 * 2 ** 20, 2 * est_bytes)))


def packed_deform_conv1d(x, params, *, kernel_size, stride=1, dilation=1,
                         tile=None, matmul_dtype=jnp.float32):
  """x: (B, C, L) float32 (PyTorch NCL). Returns (B, out_channels, L - K + 1).

  matmul_dtype: dtype of the fused main-conv MXU operands (weight + interpolation
  scratch); jnp.bfloat16 is recommended on v6e/v7x, accumulation stays f32.
  """
  if stride != 1:
    raise NotImplementedError("stride != 1 not implemented")  # TODO(synk)
  B, C, L = x.shape
  K = kernel_size
  if L < K:
    raise ValueError("input length must be >= kernel_size")
  # offset_dconv in the module is dilation-1 / 'valid', so the output length is L-K+1
  # regardless of the deform dilation (matches the PyTorch module).
  Lp = L - K + 1
  O = params['weight'].shape[0]
  KOG = params['offset_pconv_w'].shape[0]
  assert KOG == K, "offset_groups != 1 not implemented"  # TODO(synk)

  span = dilation * (K - 1) + 1
  if tile is None:
    tile = _pick_tile(C, Lp)
  tile = min(tile, _round_up(Lp, 128))
  assert tile % 128 == 0 and tile > 0
  nt = (Lp + tile - 1) // tile
  Lp_pad = nt * tile                                     # padded output length (tiles)
  halo = _round_up(span - 1, 128) if span > 1 else 0     # lane-aligned halo >= span-1
  win = tile + halo                                      # per-step x window width
  Lx_pad = Lp_pad + halo                                 # covers halo reads + conv taps
  assert Lx_pad >= L

  f32 = jnp.float32
  xp = jnp.pad(x.astype(f32), ((0, 0), (0, 0), (0, Lx_pad - L)))   # zero extension

  dw = params['offset_dconv_w'][:, 0, :].astype(f32)               # (C, K)
  pw = params['offset_pconv_w'][:, :, 0].astype(f32)               # (K, C)
  odc_g = jnp.reshape(params['odc_gamma'], (C, 1)).astype(f32)
  odc_b = jnp.reshape(params['odc_beta'], (C, 1)).astype(f32)
  odp_g = jnp.reshape(params['odp_gamma'], (K, 1)).astype(f32)
  dil_pos = (float(dilation) * jnp.arange(K, dtype=f32)).reshape(K, 1)
  odp_b = jnp.reshape(params['odp_beta'], (K, 1)).astype(f32) + dil_pos  # fold dil*k
  KC = K * C
  KC_pad = _round_up(KC, 8)
  # wmain[o, k*C + c] = weight[o, c, k]  (matches flatten(-2,-1) + stride=K conv)
  wmain = jnp.transpose(params['weight'], (0, 2, 1)).reshape(O, KC).astype(f32)
  if KC_pad != KC:
    wmain = jnp.pad(wmain, ((0, 0), (0, KC_pad - KC)))
  wmain = wmain.astype(matmul_dtype)
  bias = jnp.reshape(params['bias'], (O, 1)).astype(f32)
  alphas = jnp.asarray([params['odc_prelu'], params['odp_prelu']], f32)
  mm_bytes = jnp.dtype(matmul_dtype).itemsize

  # ---- pass 1: offset path (full-length block so the gLN stats stay global) ----
  est1 = 4 * (2 * C * Lx_pad + 2 * K * Lp_pad + (C + K) * Lp_pad
              + 2 * C * K + 2 * C + 2 * K + 2)
  offset_kernel = functools.partial(_offset_kernel, kernel_size=K, dilation=dilation,
                                    valid_len=Lp)
  rel_pos = pl.pallas_call(
      offset_kernel,
      out_shape=jax.ShapeDtypeStruct((B, K, Lp_pad), f32),
      grid=(B,),
      in_specs=[
          pl.BlockSpec((1, C, Lx_pad), lambda b: (b, 0, 0)),
          pl.BlockSpec((C, K), lambda b: (0, 0)),
          pl.BlockSpec((C, 1), lambda b: (0, 0)),
          pl.BlockSpec((C, 1), lambda b: (0, 0)),
          pl.BlockSpec((K, C), lambda b: (0, 0)),
          pl.BlockSpec((K, 1), lambda b: (0, 0)),
          pl.BlockSpec((K, 1), lambda b: (0, 0)),
          pl.BlockSpec(memory_space=pltpu.MemorySpace.SMEM),   # PReLU alphas as scalars
      ],
      out_specs=pl.BlockSpec((1, K, Lp_pad), lambda b: (b, 0, 0)),
      compiler_params=pltpu.CompilerParams(
          dimension_semantics=("parallel",),
          vmem_limit_bytes=_vmem_limit(est1)),
  )(xp, dw, odc_g, odc_b, pw, odp_g, odp_b, alphas)

  # ---- pass 2: banded interpolation + fused main conv, tiled along padded Lp ----
  est2 = (4 * (2 * C * win + 2 * K * tile + 2 * O * tile + O)
          + mm_bytes * (KC_pad * tile + 2 * O * KC_pad))
  deform_kernel = functools.partial(_deform_kernel, kernel_size=K, dilation=dilation,
                                    tile=tile)
  out = pl.pallas_call(
      deform_kernel,
      out_shape=jax.ShapeDtypeStruct((B, O, Lp_pad), f32),
      grid=(B, nt),
      in_specs=[
          # Halo window of the padded input: element-indexed lane offset t*tile (128-
          # aligned), so VMEM holds only (C, tile+halo) instead of the full length.
          pl.BlockSpec((1, C, pl.Element(win)), lambda b, t: (b, 0, t * tile)),
          pl.BlockSpec((1, K, tile), lambda b, t: (b, 0, t)),
          pl.BlockSpec((O, KC_pad), lambda b, t: (0, 0)),
          pl.BlockSpec((O, 1), lambda b, t: (0, 0)),
      ],
      out_specs=pl.BlockSpec((1, O, tile), lambda b, t: (b, 0, t)),
      scratch_shapes=[pltpu.VMEM((KC_pad, tile), matmul_dtype)],
      compiler_params=pltpu.CompilerParams(
          dimension_semantics=("parallel", "parallel"),
          vmem_limit_bytes=_vmem_limit(est2)),
  )(xp, rel_pos, wmain, bias)

  return out[:, :, :Lp]                        # drop the padded garbage tail


# --------------------------------------------------------------------------- #
# Pure-JAX reference matching the PyTorch module semantics
# --------------------------------------------------------------------------- #
def reference_forward(x, params, *, kernel_size, stride=1, dilation=1):
  HI = jax.lax.Precision.HIGHEST
  B, C, L = x.shape
  K = kernel_size
  Lp = L - K + 1
  dw = params['offset_dconv_w'][:, 0, :]                                # (C, K)
  d = sum(dw[None, :, k:k + 1] * x[:, :, k:k + Lp] for k in range(K))   # (B, C, Lp)
  d = jnp.where(d >= 0, d, params['odc_prelu'] * d)
  y = jnp.moveaxis(d, 1, 2)                                             # (B, Lp, C)
  mean = jnp.mean(y, axis=(1, 2), keepdims=True)
  var = jnp.mean((y - mean) ** 2, axis=(1, 2), keepdims=True)
  y = params['odc_gamma'] * (y - mean) / jnp.sqrt(var + EPS) + params['odc_beta']
  d = jnp.moveaxis(y, 2, 1)
  pw = params['offset_pconv_w'][:, :, 0]                                # (KOG, C)
  p = jnp.einsum('jc,bct->bjt', pw, d, precision=HI)
  p = jnp.where(p >= 0, p, params['odp_prelu'] * p)
  y = jnp.moveaxis(p, 1, 2)
  mean = jnp.mean(y, axis=(1, 2), keepdims=True)
  var = jnp.mean((y - mean) ** 2, axis=(1, 2), keepdims=True)
  y = params['odp_gamma'] * (y - mean) / jnp.sqrt(var + EPS) + params['odp_beta']
  p = jnp.moveaxis(y, 2, 1)                                             # (B, K, Lp)
  offsets = jnp.moveaxis(p, 1, 2)                                       # (B, Lp, K)
  dil_pos = jnp.arange(K, dtype=jnp.float32) * dilation
  t0 = jnp.arange(Lp, dtype=jnp.float32)[:, None] * stride              # (Lp, 1)
  T = t0 + dil_pos[None, :] + offsets                                   # (B, Lp, K)
  T = jnp.maximum(T, t0)
  T = jnp.minimum(T, t0 + dilation * (K - 1))
  l = jnp.arange(L, dtype=jnp.float32)
  W = jnp.maximum(0.0, 1.0 - jnp.abs(l[None, None, None, :] - T[..., None]))  # (B,Lp,K,L)
  interp = jnp.einsum('btkl,bcl->bctk', W, x, precision=HI)
  out = (jnp.einsum('ock,bctk->bot', params['weight'], interp, precision=HI)
         + params['bias'][None, :, None])
  return out


if __name__ == "__main__":
  B, C, O, K = 2, 8, 16, 3
  L = 300
  OG = 1
  key = jax.random.PRNGKey(0)
  ks = jax.random.split(key, 5)
  params = {
      'weight': jax.random.uniform(ks[0], (O, C, K), jnp.float32, -0.5, 0.5),
      'bias': jax.random.uniform(ks[1], (O,), jnp.float32, -0.3, 0.3),
      'offset_dconv_w': jax.random.uniform(ks[2], (C, 1, K), jnp.float32, -0.5, 0.5),
      'offset_pconv_w': jax.random.uniform(ks[3], (K * OG, C, 1), jnp.float32, -0.5, 0.5),
      'odc_gamma': jnp.ones((1, 1, C), jnp.float32),     # gLN.reset_parameters(): gamma=1
      'odc_beta': jnp.zeros((1, 1, C), jnp.float32),     # gLN.reset_parameters(): beta=0
      'odp_gamma': jnp.ones((1, 1, K * OG), jnp.float32),
      'odp_beta': jnp.zeros((1, 1, K * OG), jnp.float32),
      'odc_prelu': 0.25,                                 # nn.PReLU() default
      'odp_prelu': 0.25,
  }
  x = jax.random.normal(ks[4], (B, C, L), jnp.float32)

  # Run A: f32 operands, dilation=1, forced tile=128 -> multi-tile grid + halo windows.
  out_a = packed_deform_conv1d(x, params, kernel_size=K, dilation=1, tile=128)
  out_a = jax.block_until_ready(out_a)
  ref_a = reference_forward(x, params, kernel_size=K, dilation=1)
  assert out_a.shape == (B, O, L - K + 1), out_a.shape
  if not jnp.allclose(out_a, ref_a, atol=1e-3, rtol=1e-3):
    raise SystemExit("f32/dil=1 mismatch: max abs err %e"
                     % float(jnp.max(jnp.abs(out_a - ref_a))))

  # Run B: bf16 MXU operands, dilation=2 (exercises the dilated band / zero-padded halo).
  out_b = packed_deform_conv1d(x, params, kernel_size=K, dilation=2,
                               matmul_dtype=jnp.bfloat16)
  out_b = jax.block_until_ready(out_b)
  ref_b = reference_forward(x, params, kernel_size=K, dilation=2)
  assert out_b.shape == (B, O, L - K + 1), out_b.shape
  if not jnp.allclose(out_b, ref_b, atol=1e-1, rtol=5e-2):
    raise SystemExit("bf16/dil=2 mismatch: max abs err %e"
                     % float(jnp.max(jnp.abs(out_b - ref_b))))

  print("KERNEL_OK")
</pallas_src>

<mosaic_0001>
module attributes {stable_mosaic.version = 11 : i64} {
  func.func @_offset_kernel(%arg0: i32, %arg1: memref<1x8x512xf32, #tpu.memory_space<vmem>>, %arg2: memref<8x3xf32, #tpu.memory_space<vmem>>, %arg3: memref<8x1xf32, #tpu.memory_space<vmem>>, %arg4: memref<8x1xf32, #tpu.memory_space<vmem>>, %arg5: memref<3x8xf32, #tpu.memory_space<vmem>>, %arg6: memref<3x1xf32, #tpu.memory_space<vmem>>, %arg7: memref<3x1xf32, #tpu.memory_space<vmem>>, %arg8: memref<2xf32, #tpu.memory_space<smem>>, %arg9: memref<1x3x384xf32, #tpu.memory_space<vmem>>) attributes {dimension_semantics = [#tpu.dimension_semantics<parallel>], iteration_bounds = array<i64: 2>, scalar_prefetch = 0 : i64, scratch_operands = 0 : i64, tpu.core_type = #tpu.core_type<tc>, window_params = [{transform_indices = @transform_0, window_bounds = array<i64: 1, 8, 512>}, {pipeline_mode = #tpu.pipeline_mode<synchronous>, transform_indices = @transform_1, window_bounds = array<i64: 8, 3>}, {pipeline_mode = #tpu.pipeline_mode<synchronous>, transform_indices = @transform_2, window_bounds = array<i64: 8, 1>}, {pipeline_mode = #tpu.pipeline_mode<synchronous>, transform_indices = @transform_3, window_bounds = array<i64: 8, 1>}, {pipeline_mode = #tpu.pipeline_mode<synchronous>, transform_indices = @transform_4, window_bounds = array<i64: 3, 8>}, {pipeline_mode = #tpu.pipeline_mode<synchronous>, transform_indices = @transform_5, window_bounds = array<i64: 3, 1>}, {pipeline_mode = #tpu.pipeline_mode<synchronous>, transform_indices = @transform_6, window_bounds = array<i64: 3, 1>}, {transform_indices = @transform_7, window_bounds = array<i64: 2>}, {transform_indices = @transform_8, window_bounds = array<i64: 1, 3, 384>}]} {
    %c0 = arith.constant 0 : index
    %c0_0 = arith.constant 0 : index
    %c0_1 = arith.constant 0 : index
    %0 = vector.load %arg1[%c0, %c0_0, %c0_1] : memref<1x8x512xf32, #tpu.memory_space<vmem>>, vector<1x8x512xf32>
    %1 = vector.shape_cast %0 : vector<1x8x512xf32> to vector<8x512xf32>
    %c0_2 = arith.constant 0 : index
    %c0_3 = arith.constant 0 : index
    %2 = vector.load %arg2[%c0_2, %c0_3] : memref<8x3xf32, #tpu.memory_space<vmem>>, vector<8x3xf32>
    %3 = vector.extract_strided_slice %2 {offsets = [0, 0], sizes = [8, 1], strides = [1, 1]} : vector<8x3xf32> to vector<8x1xf32>
    %4 = vector.extract_strided_slice %1 {offsets = [0, 0], sizes = [8, 384], strides = [1, 1]} : vector<8x512xf32> to vector<8x384xf32>
    %5 = vector.broadcast %3 : vector<8x1xf32> to vector<8x384xf32>
    %6 = arith.mulf %5, %4 : vector<8x384xf32>
    %7 = vector.extract_strided_slice %2 {offsets = [0, 1], sizes = [8, 1], strides = [1, 1]} : vector<8x3xf32> to vector<8x1xf32>
    %8 = vector.extract_strided_slice %1 {offsets = [0, 1], sizes = [8, 384], strides = [1, 1]} : vector<8x512xf32> to vector<8x384xf32>
    %9 = vector.broadcast %7 : vector<8x1xf32> to vector<8x384xf32>
    %10 = arith.mulf %9, %8 : vector<8x384xf32>
    %11 = arith.addf %6, %10 : vector<8x384xf32>
    %12 = vector.extract_strided_slice %2 {offsets = [0, 2], sizes = [8, 1], strides = [1, 1]} : vector<8x3xf32> to vector<8x1xf32>
    %13 = vector.extract_strided_slice %1 {offsets = [0, 2], sizes = [8, 384], strides = [1, 1]} : vector<8x512xf32> to vector<8x384xf32>
    %14 = vector.broadcast %12 : vector<8x1xf32> to vector<8x384xf32>
    %15 = arith.mulf %14, %13 : vector<8x384xf32>
    %16 = arith.addf %11, %15 : vector<8x384xf32>
    %c0_4 = arith.constant 0 : index
    %17 = memref.load %arg8[%c0_4] : memref<2xf32, #tpu.memory_space<smem>>
    %cst = arith.constant 0.000000e+00 : f32
    %18 = vector.broadcast %cst : f32 to vector<8x384xf32>
    %19 = arith.cmpf oge, %16, %18 : vector<8x384xf32>
    %20 = vector.broadcast %17 : f32 to vector<8x384xf32>
    %21 = arith.mulf %20, %16 : vector<8x384xf32>
    %22 = arith.select %19, %16, %21 : vector<8x384xi1>, vector<8x384xf32>
    %23 = tpu.iota {dimensions = array<i32: 1>} : vector<1x384xi32>
    %c298_i32 = arith.constant 298 : i32
    %24 = vector.broadcast %c298_i32 : i32 to vector<1x384xi32>
    %25 = arith.cmpi slt, %23, %24 : vector<1x384xi32>
    %cst_5 = arith.constant 0.000000e+00 : f32
    %26 = vector.shape_cast %25 : vector<1x384xi1> to vector<1x384xi1>
    %27 = vector.broadcast %26 : vector<1x384xi1> to vector<8x384xi1>
    %28 = vector.broadcast %cst_5 : f32 to vector<8x384xf32>
    %29 = arith.select %27, %22, %28 : vector<8x384xi1>, vector<8x384xf32>
    %30 = vector.shape_cast %29 : vector<8x384xf32> to vector<1x8x384xf32>
    %cst_6 = arith.constant dense<0.000000e+00> : vector<1xf32>
    %31 = vector.multi_reduction <add>, %30, %cst_6 [1, 2] : vector<1x8x384xf32> to vector<1xf32>
    %32 = vector.shape_cast %31 : vector<1xf32> to vector<1x1x1xf32>
    %33 = vector.extract %32[0, 0, 0] : f32 from vector<1x1x1xf32>
    %cst_7 = arith.constant 2.384000e+03 : f32
    %34 = arith.divf %33, %cst_7 : f32
    %35 = arith.mulf %29, %29 : vector<8x384xf32>
    %36 = vector.shape_cast %35 : vector<8x384xf32> to vector<1x8x384xf32>
    %cst_8 = arith.constant dense<0.000000e+00> : vector<1xf32>
    %37 = vector.multi_reduction <add>, %36, %cst_8 [1, 2] : vector<1x8x384xf32> to vector<1xf32>
    %38 = vector.shape_cast %37 : vector<1xf32> to vector<1x1x1xf32>
    %39 = vector.extract %38[0, 0, 0] : f32 from vector<1x1x1xf32>
    %cst_9 = arith.constant 2.384000e+03 : f32
    %40 = arith.divf %39, %cst_9 : f32
    %41 = arith.mulf %34, %34 : f32
    %42 = arith.subf %40, %41 : f32
    %cst_10 = arith.constant 0.000000e+00 : f32
    %43 = arith.maximumf %42, %cst_10 : f32
    %cst_11 = arith.constant 9.99999971E-10 : f32
    %44 = arith.addf %43, %cst_11 : f32
    %45 = math.rsqrt %44 : f32
    %46 = vector.broadcast %34 : f32 to vector<8x384xf32>
    %47 = arith.subf %22, %46 : vector<8x384xf32>
    %c0_12 = arith.constant 0 : index
    %c0_13 = arith.constant 0 : index
    %48 = vector.load %arg3[%c0_12, %c0_13] : memref<8x1xf32, #tpu.memory_space<vmem>>, vector<8x1xf32>
    %49 = vector.broadcast %45 : f32 to vector<8x1xf32>
    %50 = arith.mulf %48, %49 : vector<8x1xf32>
    %51 = vector.broadcast %50 : vector<8x1xf32> to vector<8x384xf32>
    %52 = arith.mulf %47, %51 : vector<8x384xf32>
    %c0_14 = arith.constant 0 : index
    %c0_15 = arith.constant 0 : index
    %53 = vector.load %arg4[%c0_14, %c0_15] : memref<8x1xf32, #tpu.memory_space<vmem>>, vector<8x1xf32>
    %54 = vector.broadcast %53 : vector<8x1xf32> to vector<8x384xf32>
    %55 = arith.addf %52, %54 : vector<8x384xf32>
    %c0_16 = arith.constant 0 : index
    %c0_17 = arith.constant 0 : index
    %56 = vector.load %arg5[%c0_16, %c0_17] : memref<3x8xf32, #tpu.memory_space<vmem>>, vector<3x8xf32>
    %cst_18 = arith.constant dense<0.000000e+00> : vector<3x384xf32>
    %57 = tpu.matmul %56, %55, %cst_18 {dimension_numbers = #tpu.dot_dimension_numbers<[1], [0], [0], [1], [0, 0, 1, 1], [], []>} : vector<3x8xf32>, vector<8x384xf32>, vector<3x384xf32> -> vector<3x384xf32>
    %c1 = arith.constant 1 : index
    %58 = memref.load %arg8[%c1] : memref<2xf32, #tpu.memory_space<smem>>
    %cst_19 = arith.constant 0.000000e+00 : f32
    %59 = vector.broadcast %cst_19 : f32 to vector<3x384xf32>
    %60 = arith.cmpf oge, %57, %59 : vector<3x384xf32>
    %61 = vector.broadcast %58 : f32 to vector<3x384xf32>
    %62 = arith.mulf %61, %57 : vector<3x384xf32>
    %63 = arith.select %60, %57, %62 : vector<3x384xi1>, vector<3x384xf32>
    %cst_20 = arith.constant 0.000000e+00 : f32
    %64 = vector.shape_cast %25 : vector<1x384xi1> to vector<1x384xi1>
    %65 = vector.broadcast %64 : vector<1x384xi1> to vector<3x384xi1>
    %66 = vector.broadcast %cst_20 : f32 to vector<3x384xf32>
    %67 = arith.select %65, %63, %66 : vector<3x384xi1>, vector<3x384xf32>
    %68 = vector.shape_cast %67 : vector<3x384xf32> to vector<1x3x384xf32>
    %cst_21 = arith.constant dense<0.000000e+00> : vector<1xf32>
    %69 = vector.multi_reduction <add>, %68, %cst_21 [1, 2] : vector<1x3x384xf32> to vector<1xf32>
    %70 = vector.shape_cast %69 : vector<1xf32> to vector<1x1x1xf32>
    %71 = vector.extract %70[0, 0, 0] : f32 from vector<1x1x1xf32>
    %cst_22 = arith.constant 8.940000e+02 : f32
    %72 = arith.divf %71, %cst_22 : f32
    %73 = arith.mulf %67, %67 : vector<3x384xf32>
    %74 = vector.shape_cast %73 : vector<3x384xf32> to vector<1x3x384xf32>
    %cst_23 = arith.constant dense<0.000000e+00> : vector<1xf32>
    %75 = vector.multi_reduction <add>, %74, %cst_23 [1, 2] : vector<1x3x384xf32> to vector<1xf32>
    %76 = vector.shape_cast %75 : vector<1xf32> to vector<1x1x1xf32>
    %77 = vector.extract %76[0, 0, 0] : f32 from vector<1x1x1xf32>
    %cst_24 = arith.constant 8.940000e+02 : f32
    %78 = arith.divf %77, %cst_24 : f32
    %79 = arith.mulf %72, %72 : f32
    %80 = arith.subf %78, %79 : f32
    %cst_25 = arith.constant 0.000000e+00 : f32
    %81 = arith.maximumf %80, %cst_25 : f32
    %cst_26 = arith.constant 9.99999971E-10 : f32
    %82 = arith.addf %81, %cst_26 : f32
    %83 = math.rsqrt %82 : f32
    %84 = vector.broadcast %72 : f32 to vector<3x384xf32>
    %85 = arith.subf %63, %84 : vector<3x384xf32>
    %c0_27 = arith.constant 0 : index
    %c0_28 = arith.constant 0 : index
    %86 = vector.load %arg6[%c0_27, %c0_28] : memref<3x1xf32, #tpu.memory_space<vmem>>, vector<3x1xf32>
    %87 = vector.broadcast %83 : f32 to vector<3x1xf32>
    %88 = arith.mulf %86, %87 : vector<3x1xf32>
    %89 = vector.broadcast %88 : vector<3x1xf32> to vector<3x384xf32>
    %90 = arith.mulf %85, %89 : vector<3x384xf32>
    %c0_29 = arith.constant 0 : index
    %c0_30 = arith.constant 0 : index
    %91 = vector.load %arg7[%c0_29, %c0_30] : memref<3x1xf32, #tpu.memory_space<vmem>>, vector<3x1xf32>
    %92 = vector.broadcast %91 : vector<3x1xf32> to vector<3x384xf32>
    %93 = arith.addf %90, %92 : vector<3x384xf32>
    %cst_31 = arith.constant 0.000000e+00 : f32
    %cst_32 = arith.constant 2.000000e+00 : f32
    %94 = vector.broadcast %cst_31 : f32 to vector<3x384xf32>
    %95 = arith.maximumf %94, %93 : vector<3x384xf32>
    %96 = vector.broadcast %cst_32 : f32 to vector<3x384xf32>
    %97 = arith.minimumf %96, %95 : vector<3x384xf32>
    %c0_33 = arith.constant 0 : index
    %c0_34 = arith.constant 0 : index
    %c0_35 = arith.constant 0 : index
    %98 = vector.load %arg9[%c0_33, %c0_34, %c0_35] : memref<1x3x384xf32, #tpu.memory_space<vmem>>, vector<1x3x384xf32>
    %99 = vector.shape_cast %98 : vector<1x3x384xf32> to vector<3x384xf32>
    %100 = vector.shape_cast %97 : vector<3x384xf32> to vector<1x3x384xf32>
    tpu.vector_store %arg9[%c0_33, %c0_34, %c0_35], %100 {strides = array<i32>} : memref<1x3x384xf32, #tpu.memory_space<vmem>>, vector<1x3x384xf32>,
    return
  }
  func.func @transform_0(%arg0: i32) -> (i32, i32, i32) {
    %c0_i32 = arith.constant 0 : i32
    %c0_i32_0 = arith.constant 0 : i32
    %c0_i32_1 = arith.constant 0 : i32
    return %arg0, %c0_i32, %c0_i32_0 : i32, i32, i32
  }
  func.func @transform_1(%arg0: i32) -> (i32, i32) {
    %c0_i32 = arith.constant 0 : i32
    %c0_i32_0 = arith.constant 0 : i32
    %c0_i32_1 = arith.constant 0 : i32
    return %c0_i32, %c0_i32_0 : i32, i32
  }
  func.func @transform_2(%arg0: i32) -> (i32, i32) {
    %c0_i32 = arith.constant 0 : i32
    %c0_i32_0 = arith.constant 0 : i32
    %c0_i32_1 = arith.constant 0 : i32
    return %c0_i32, %c0_i32_0 : i32, i32
  }
  func.func @transform_3(%arg0: i32) -> (i32, i32) {
    %c0_i32 = arith.constant 0 : i32
    %c0_i32_0 = arith.constant 0 : i32
    %c0_i32_1 = arith.constant 0 : i32
    return %c0_i32, %c0_i32_0 : i32, i32
  }
  func.func @transform_4(%arg0: i32) -> (i32, i32) {
    %c0_i32 = arith.constant 0 : i32
    %c0_i32_0 = arith.constant 0 : i32
    %c0_i32_1 = arith.constant 0 : i32
    return %c0_i32, %c0_i32_0 : i32, i32
  }
  func.func @transform_5(%arg0: i32) -> (i32, i32) {
    %c0_i32 = arith.constant 0 : i32
    %c0_i32_0 = arith.constant 0 : i32
    %c0_i32_1 = arith.constant 0 : i32
    return %c0_i32, %c0_i32_0 : i32, i32
  }
  func.func @transform_6(%arg0: i32) -> (i32, i32) {
    %c0_i32 = arith.constant 0 : i32
    %c0_i32_0 = arith.constant 0 : i32
    %c0_i32_1 = arith.constant 0 : i32
    return %c0_i32, %c0_i32_0 : i32, i32
  }
  func.func @transform_7(%arg0: i32) -> i32 {
    %c0_i32 = arith.constant 0 : i32
    %c0_i32_0 = arith.constant 0 : i32
    return %c0_i32 : i32
  }
  func.func @transform_8(%arg0: i32) -> (i32, i32, i32) {
    %c0_i32 = arith.constant 0 : i32
    %c0_i32_0 = arith.constant 0 : i32
    %c0_i32_1 = arith.constant 0 : i32
    return %arg0, %c0_i32, %c0_i32_0 : i32, i32, i32
  }
}

</mosaic_0001>

<llo_original>
// kernel: tpu_custom_call.1
$region0: #{tpu_custom_call.1}
  #allocation0 [shape = 'u32[]', space=smem, size = 0x4, offset = 0x4, fixed_abs, tag = 'smem constant byte address 0x4 - core index']
  #allocation1 [shape = 'u32[144,128]{1,0:T(1,128)}', space=vmem, size = 0x12000, scoped, tag = 'internal scratch']
  %s0 = inlined_call_operand.hbm [shape: f32[2,8,512], index: 0, kind: input, shape index: {}]
  %s1 = inlined_call_operand.vmem [shape: f32[8,3], index: 1, kind: input, shape index: {}]
  %s2 = inlined_call_operand.vmem [shape: f32[8,1], index: 2, kind: input, shape index: {}]
  %s3 = inlined_call_operand.vmem [shape: f32[8,1], index: 3, kind: input, shape index: {}]
  %s4 = inlined_call_operand.vmem [shape: f32[3,8], index: 4, kind: input, shape index: {}]
  %s5 = inlined_call_operand.vmem [shape: f32[3,1], index: 5, kind: input, shape index: {}]
  %s6 = inlined_call_operand.vmem [shape: f32[3,1], index: 6, kind: input, shape index: {}]
  %s7 = inlined_call_operand.vmem [shape: f32[2], index: 7, kind: input, shape index: {}]
  %s8 = inlined_call_operand.vmem [shape: f32[2,3,384], index: 8, kind: output, shape index: {}]
  %s9 = sld [smem:[#allocation0]]
  $region73: #{tpu_custom_call.1} parent=0
    _
  %s11 = ssub.s32 1, %s9
  %s12 = scalar_select 0, %s11, %s9
  $region1: #{tpu_custom_call.1} parent=0
    #allocation2 [shape = 'u8[32768]{0}', space=vmem, size = 0x8000, scoped, tag = 'input window, operand 0']
    #allocation3 [shape = 's32[2]{0}', space=sflag, size = 0x8, scoped, tag = 'scoped memory for tpu_custom_call.1']
    #allocation4 [shape = 's32[2]{0}', space=sflag, size = 0x8, scoped, tag = 'scoped memory for tpu_custom_call.1']
    #allocation5 [shape = 'u8[512]{0}', space=smem, size = 0x200, scoped, tag = 'input window, operand 7, single buffered']
    %13 = vsyncpa [#allocation3], 0
    %s14 = scalar_lea.sflag [#allocation3], 1
    %15 = vsyncpa %s14, 0
    %16 = vsyncpa [#allocation4], 0
    loop: start=0, step=1, limit=4
    $region2: #{tpu_custom_call.1} parent=1 // loop_pre_header
      _
    $region3: #{tpu_custom_call.1} parent=1 // loop_header
      %s18 = sphi 0, %s22
      %p19 = scmp.ge.s32.totalorder %s18, 4
      %s28 = sphi 0, %s30
      %s31 = sphi 0, %s28
      %s32 = sphi 0, %s31
      %s48 = sphi 0, %s32
      %s52 = sphi 0, %s52
      %s54 = sphi 0, %s52
      %s55 = sphi 0, %s54
      %s69 = sphi 0, %s55
      %s73 = sphi 0, %s73
      %s75 = sphi 0, %s73
      %s76 = sphi 0, %s75
      %s90 = sphi 0, %s76
      %s94 = sphi 0, %s94
      %s96 = sphi 0, %s94
      %s97 = sphi 0, %s96
      %s111 = sphi 0, %s97
      %s115 = sphi 0, %s115
      %s117 = sphi 0, %s115
      %s118 = sphi 0, %s117
      %s132 = sphi 0, %s118
      %s136 = sphi 0, %s136
      %s138 = sphi 0, %s136
      %s139 = sphi 0, %s138
      %s153 = sphi 0, %s139
      %s157 = sphi 0, %s157
      %s159 = sphi 0, %s157
      %s160 = sphi 0, %s159
      %s174 = sphi 0, %s160
      %s178 = sphi 0, %s178
      %s180 = sphi 0, %s178
      %s181 = sphi 0, %s180
      %s195 = sphi 0, %s181
      %s201 = sphi 0, %s203
      %s204 = sphi 0, %s201
      %s205 = sphi 0, %s204
      %s221 = sphi 0, %s205
    $region4: #{tpu_custom_call.1} parent=1 // loop_header_branch
      %21 = sbr.rel (%p19) target = $region8
    $region5: #{tpu_custom_call.1} parent=1 // loop_body
      %s23 = ssub.s32 %s18, 1
      %s24 = ssub.s32 %s18, 2
      %s25 = sadd.s32 %s18, 1
      %s26 = ssub.s32 %s18, %s25
      %p27 = scmp.eq.s32.totalorder %s26, 0
      %s29 = sadd.s32 %s28, 1
      %s30 = scalar_select %p27, %s28, %s29
      %p33 = pneg %p27
      %p34 = scmp.eq.s32.totalorder %s18, 1
      %p35 = por %p33, %p34
      %p36 = scmp.ne.s32.totalorder %s28, %s31
      %p37 = scmp.eq.s32.totalorder %s18, 0
      %p38 = por %p36, %p37
      %p39 = scmp.ne.s32.totalorder %s28, %s31
      %p40 = scmp.eq.s32.totalorder %s23, 1
      %p41 = por %p39, %p40
      %p42 = scmp.ne.s32.totalorder %s31, %s32
      %p43 = scmp.eq.s32.totalorder %s23, 0
      %p44 = por %p42, %p43
      %p45 = scmp.ne.s32.totalorder %s31, %s32
      %p46 = scmp.eq.s32.totalorder %s24, 1
      %p47 = por %p45, %p46
      %p49 = scmp.ne.s32.totalorder %s32, %s48
      %p50 = scmp.eq.s32.totalorder %s24, 0
      %p51 = por %p49, %p50
      %s53 = sadd.s32 %s52, 1
      %p56 = scmp.eq.s32.totalorder %s18, 1
      %p57 = scmp.ne.s32.totalorder %s52, %s54
      %p58 = scmp.eq.s32.totalorder %s18, 0
      %p59 = por %p57, %p58
      %p60 = scmp.ne.s32.totalorder %s52, %s54
      %p61 = scmp.eq.s32.totalorder %s23, 1
      %p62 = por %p60, %p61
      %p63 = scmp.ne.s32.totalorder %s54, %s55
      %p64 = scmp.eq.s32.totalorder %s23, 0
      %p65 = por %p63, %p64
      %p66 = scmp.ne.s32.totalorder %s54, %s55
      %p67 = scmp.eq.s32.totalorder %s24, 1
      %p68 = por %p66, %p67
      %p70 = scmp.ne.s32.totalorder %s55, %s69
      %p71 = scmp.eq.s32.totalorder %s24, 0
      %p72 = por %p70, %p71
      %s74 = sadd.s32 %s73, 1
      %p77 = scmp.eq.s32.totalorder %s18, 1
      %p78 = scmp.ne.s32.totalorder %s73, %s75
      %p79 = scmp.eq.s32.totalorder %s18, 0
      %p80 = por %p78, %p79
      %p81 = scmp.ne.s32.totalorder %s73, %s75
      %p82 = scmp.eq.s32.totalorder %s23, 1
      %p83 = por %p81, %p82
      %p84 = scmp.ne.s32.totalorder %s75, %s76
      %p85 = scmp.eq.s32.totalorder %s23, 0
      %p86 = por %p84, %p85
      %p87 = scmp.ne.s32.totalorder %s75, %s76
      %p88 = scmp.eq.s32.totalorder %s24, 1
      %p89 = por %p87, %p88
      %p91 = scmp.ne.s32.totalorder %s76, %s90
      %p92 = scmp.eq.s32.totalorder %s24, 0
      %p93 = por %p91, %p92
      %s95 = sadd.s32 %s94, 1
      %p98 = scmp.eq.s32.totalorder %s18, 1
      %p99 = scmp.ne.s32.totalorder %s94, %s96
      %p100 = scmp.eq.s32.totalorder %s18, 0
      %p101 = por %p99, %p100
      %p102 = scmp.ne.s32.totalorder %s94, %s96
      %p103 = scmp.eq.s32.totalorder %s23, 1
      %p104 = por %p102, %p103
      %p105 = scmp.ne.s32.totalorder %s96, %s97
      %p106 = scmp.eq.s32.totalorder %s23, 0
      %p107 = por %p105, %p106
      %p108 = scmp.ne.s32.totalorder %s96, %s97
      %p109 = scmp.eq.s32.totalorder %s24, 1
      %p110 = por %p108, %p109
      %p112 = scmp.ne.s32.totalorder %s97, %s111
      %p113 = scmp.eq.s32.totalorder %s24, 0
      %p114 = por %p112, %p113
      %s116 = sadd.s32 %s115, 1
      %p119 = scmp.eq.s32.totalorder %s18, 1
      %p120 = scmp.ne.s32.totalorder %s115, %s117
      %p121 = scmp.eq.s32.totalorder %s18, 0
      %p122 = por %p120, %p121
      %p123 = scmp.ne.s32.totalorder %s115, %s117
      %p124 = scmp.eq.s32.totalorder %s23, 1
      %p125 = por %p123, %p124
      %p126 = scmp.ne.s32.totalorder %s117, %s118
      %p127 = scmp.eq.s32.totalorder %s23, 0
      %p128 = por %p126, %p127
      %p129 = scmp.ne.s32.totalorder %s117, %s118
      %p130 = scmp.eq.s32.totalorder %s24, 1
      %p131 = por %p129, %p130
      %p133 = scmp.ne.s32.totalorder %s118, %s132
      %p134 = scmp.eq.s32.totalorder %s24, 0
      %p135 = por %p133, %p134
      %s137 = sadd.s32 %s136, 1
      %p140 = scmp.eq.s32.totalorder %s18, 1
      %p141 = scmp.ne.s32.totalorder %s136, %s138
      %p142 = scmp.eq.s32.totalorder %s18, 0
      %p143 = por %p141, %p142
      %p144 = scmp.ne.s32.totalorder %s136, %s138
      %p145 = scmp.eq.s32.totalorder %s23, 1
      %p146 = por %p144, %p145
      %p147 = scmp.ne.s32.totalorder %s138, %s139
      %p148 = scmp.eq.s32.totalorder %s23, 0
      %p149 = por %p147, %p148
      %p150 = scmp.ne.s32.totalorder %s138, %s139
      %p151 = scmp.eq.s32.totalorder %s24, 1
      %p152 = por %p150, %p151
      %p154 = scmp.ne.s32.totalorder %s139, %s153
      %p155 = scmp.eq.s32.totalorder %s24, 0
      %p156 = por %p154, %p155
      %s158 = sadd.s32 %s157, 1
      %p161 = scmp.eq.s32.totalorder %s18, 1
      %p162 = scmp.ne.s32.totalorder %s157, %s159
      %p163 = scmp.eq.s32.totalorder %s18, 0
      %p164 = por %p162, %p163
      %p165 = scmp.ne.s32.totalorder %s157, %s159
      %p166 = scmp.eq.s32.totalorder %s23, 1
      %p167 = por %p165, %p166
      %p168 = scmp.ne.s32.totalorder %s159, %s160
      %p169 = scmp.eq.s32.totalorder %s23, 0
      %p170 = por %p168, %p169
      %p171 = scmp.ne.s32.totalorder %s159, %s160
      %p172 = scmp.eq.s32.totalorder %s24, 1
      %p173 = por %p171, %p172
      %p175 = scmp.ne.s32.totalorder %s160, %s174
      %p176 = scmp.eq.s32.totalorder %s24, 0
      %p177 = por %p175, %p176
      %s179 = sadd.s32 %s178, 1
      %p182 = scmp.eq.s32.totalorder %s18, 1
      %p183 = scmp.ne.s32.totalorder %s178, %s180
      %p184 = scmp.eq.s32.totalorder %s18, 0
      %p185 = por %p183, %p184
      %p186 = scmp.ne.s32.totalorder %s178, %s180
      %p187 = scmp.eq.s32.totalorder %s23, 1
      %p188 = por %p186, %p187
      %p189 = scmp.ne.s32.totalorder %s180, %s181
      %p190 = scmp.eq.s32.totalorder %s23, 0
      %p191 = por %p189, %p190
      %p192 = scmp.ne.s32.totalorder %s180, %s181
      %p193 = scmp.eq.s32.totalorder %s24, 1
      %p194 = por %p192, %p193
      %p196 = scmp.ne.s32.totalorder %s181, %s195
      %p197 = scmp.eq.s32.totalorder %s24, 0
      %p198 = por %p196, %p197
      %s199 = ssub.s32 %s18, %s25
      %p200 = scmp.eq.s32.totalorder %s199, 0
      %s202 = sadd.s32 %s201, 1
      %s203 = scalar_select %p200, %s201, %s202
      %p206 = pneg %p200
      %p207 = scmp.eq.s32.totalorder %s18, 1
      %p208 = por %p206, %p207
      %p209 = scmp.ne.s32.totalorder %s201, %s204
      %p210 = scmp.eq.s32.totalorder %s18, 0
      %p211 = por %p209, %p210
      %p212 = scmp.ne.s32.totalorder %s201, %s204
      %p213 = scmp.eq.s32.totalorder %s23, 1
      %p214 = por %p212, %p213
      %p215 = scmp.ne.s32.totalorder %s204, %s205
      %p216 = scmp.eq.s32.totalorder %s23, 0
      %p217 = por %p215, %p216
      %p218 = scmp.ne.s32.totalorder %s204, %s205
      %p219 = scmp.eq.s32.totalorder %s24, 1
      %p220 = por %p218, %p219
      %p222 = scmp.ne.s32.totalorder %s205, %s221
      %p223 = scmp.eq.s32.totalorder %s24, 0
      %p224 = por %p222, %p223
      %p225 = scmp.le.s32.totalorder 1, %s18
      %p226 = scmp.lt.s32.totalorder %s18, 3
      %p227 = pnand %p225, %p226
      %p228 = pneg %p227
      // Predicated region
      $region9: #{tpu_custom_call.1} parent=5 // pred_check
        _
      $region10: #{tpu_custom_call.1} parent=5 // pred_check_branch
        %230 = sbr.rel (%p227) target = $region12
      $region11: #{tpu_custom_call.1} parent=5 // pred_region
        %s231 = ssub.s32 %s18, 1
        // Predicated region
        $region13: #{tpu_custom_call.1} parent=11 // pred_check
          %p232 = pneg %p65
        $region14: #{tpu_custom_call.1} parent=11 // pred_check_branch
          %234 = sbr.rel (%p232) target = $region16
        $region15: #{tpu_custom_call.1} parent=11 // pred_region
          _
        $region16: #{tpu_custom_call.1} parent=11 // pred_fallthru
          _
        // Predicated region
        $region17: #{tpu_custom_call.1} parent=11 // pred_check
          %p235 = pneg %p86
        $region18: #{tpu_custom_call.1} parent=11 // pred_check_branch
          %237 = sbr.rel (%p235) target = $region20
        $region19: #{tpu_custom_call.1} parent=11 // pred_region
          _
        $region20: #{tpu_custom_call.1} parent=11 // pred_fallthru
          _
        // Predicated region
        $region21: #{tpu_custom_call.1} parent=11 // pred_check
          %p238 = pneg %p107
        $region22: #{tpu_custom_call.1} parent=11 // pred_check_branch
          %240 = sbr.rel (%p238) target = $region24
        $region23: #{tpu_custom_call.1} parent=11 // pred_region
          _
        $region24: #{tpu_custom_call.1} parent=11 // pred_fallthru
          _
        // Predicated region
        $region25: #{tpu_custom_call.1} parent=11 // pred_check
          %p241 = pneg %p128
        $region26: #{tpu_custom_call.1} parent=11 // pred_check_branch
          %243 = sbr.rel (%p241) target = $region28
        $region27: #{tpu_custom_call.1} parent=11 // pred_region
          _
        $region28: #{tpu_custom_call.1} parent=11 // pred_fallthru
          _
        // Predicated region
        $region29: #{tpu_custom_call.1} parent=11 // pred_check
          %p244 = pneg %p149
        $region30: #{tpu_custom_call.1} parent=11 // pred_check_branch
          %246 = sbr.rel (%p244) target = $region32
        $region31: #{tpu_custom_call.1} parent=11 // pred_region
          _
        $region32: #{tpu_custom_call.1} parent=11 // pred_fallthru
          _
        // Predicated region
        $region33: #{tpu_custom_call.1} parent=11 // pred_check
          %p247 = pneg %p170
        $region34: #{tpu_custom_call.1} parent=11 // pred_check_branch
          %249 = sbr.rel (%p247) target = $region36
        $region35: #{tpu_custom_call.1} parent=11 // pred_region
          _
        $region36: #{tpu_custom_call.1} parent=11 // pred_fallthru
          _
        // Predicated region
        $region37: #{tpu_custom_call.1} parent=11 // pred_check
          %p250 = pneg %p191
        $region38: #{tpu_custom_call.1} parent=11 // pred_check_branch
          %252 = sbr.rel (%p250) target = $region40
        $region39: #{tpu_custom_call.1} parent=11 // pred_region
          %s254 = ssub.s32 16, 16
          %255 = vsyncadd [#allocation4], %s254
          %s257 = sshll.u32 %s7, 4
          %s258 = int_to_ptr.vmem [resolvable:$true] %s257
          %260 = dma.vmem_to_smem %s258, 16, [#allocation5], [#allocation4]
        $region40: #{tpu_custom_call.1} parent=11 // pred_fallthru
          _
      $region12: #{tpu_custom_call.1} parent=5 // pred_fallthru
        _
      %p261 = scmp.lt.s32.totalorder %s18, 2
      // Predicated region
      $region41: #{tpu_custom_call.1} parent=5 // pred_check
        %p262 = pneg %p261
      $region42: #{tpu_custom_call.1} parent=5 // pred_check_branch
        %264 = sbr.rel (%p262) target = $region44
      $region43: #{tpu_custom_call.1} parent=5 // pred_region
        // Predicated region
        $region45: #{tpu_custom_call.1} parent=43 // pred_check
          %p265 = pneg %p38
        $region46: #{tpu_custom_call.1} parent=43 // pred_check_branch
          %267 = sbr.rel (%p265) target = $region48
        $region47: #{tpu_custom_call.1} parent=43 // pred_region
          %s268 = sand.u32 %s28, 1
          %s269 = scalar_lea.sflag [#allocation3], %s268
          %s270 = sand.u32 %s28, 1
          %s271 = smul.addr %s270, 32
          %s272 = scalar_lea.vmem [#allocation2], %s271
          %s274 = ssub.s32 512, 512
          %275 = vsyncadd %s269, %s274
          %s276 = smul.addr %s18, 4
          %s277 = smul.addr %s276, 128
          %s278 = scalar_lea.hbm %s0, %s277
          %s280 = sshll.u32 %s272, 4
          %s281 = int_to_ptr.vmem [resolvable:$true] %s280
          %283 = dma.hbm_to_vmem [thread:$0]  %s278, 512, %s281, %s269
        $region48: #{tpu_custom_call.1} parent=43 // pred_fallthru
          _
      $region44: #{tpu_custom_call.1} parent=5 // pred_fallthru
        _
      %p284 = scmp.le.s32.totalorder 1, %s18
      %p285 = scmp.lt.s32.totalorder %s18, 3
      %p286 = pnand %p284, %p285
      %p287 = pneg %p286
      // Predicated region
      $region49: #{tpu_custom_call.1} parent=5 // pred_check
        _
      $region50: #{tpu_custom_call.1} parent=5 // pred_check_branch
        %289 = sbr.rel (%p286) target = $region52
      $region51: #{tpu_custom_call.1} parent=5 // pred_region
        %s290 = ssub.s32 %s18, 1
        %s291 = sand.u32 %s31, 1
        %s292 = scalar_lea.sflag [#allocation3], %s291
        %s293 = sand.u32 %s31, 1
        %s294 = smul.addr %s293, 32
        %s295 = scalar_lea.vmem [#allocation2], %s294
        // Predicated region
        $region53: #{tpu_custom_call.1} parent=51 // pred_check
          %p296 = pneg %p44
        $region54: #{tpu_custom_call.1} parent=51 // pred_check_branch
          %298 = sbr.rel (%p296) target = $region56
        $region55: #{tpu_custom_call.1} parent=51 // pred_region
          %299 = dma.done %s292, 512
        $region56: #{tpu_custom_call.1} parent=51 // pred_fallthru
          _
        // Predicated region
        $region57: #{tpu_custom_call.1} parent=51 // pred_check
          %p300 = pneg %p191
        $region58: #{tpu_custom_call.1} parent=51 // pred_check_branch
          %302 = sbr.rel (%p300) target = $region60
        $region59: #{tpu_custom_call.1} parent=51 // pred_region
          %303 = dma.done [#allocation4], 16
        $region60: #{tpu_custom_call.1} parent=51 // pred_fallthru
          _
        %304 = sfence
        %s305 = sand.u32 %s31, 1
        %s306 = scalar_lea.sflag [#allocation3], %s305
        %s307 = sand.u32 %s31, 1
        %s308 = smul.addr %s307, 32
        %s309 = scalar_lea.vmem [#allocation2], %s308
        %p310 = pneg %p44
        %p311 = pneg %p41
        %p312 = pneg %p65
        %p313 = pneg %p62
        %p314 = pneg %p86
        %p315 = pneg %p83
        %p316 = pneg %p107
        %p317 = pneg %p104
        %p318 = pneg %p128
        %p319 = pneg %p125
        %p320 = pneg %p149
        %p321 = pneg %p146
        %p322 = pneg %p170
        %p323 = pneg %p167
        %p324 = pneg %p191
        %p325 = pneg %p188
        %p326 = pneg %p217
        %p327 = pneg %p214
        %p328 = scmp.lt.s32.totalorder %s23, 1
        %s329 = scalar_select %p328, %s23, 1
        %s330 = smul.addr %s329, 3
        %s331 = smul.addr %s330, 4
        %s332 = scalar_lea.vmem %s8, %s331
        %p333 = scmp.lt.s32.totalorder %s23, 1
        %s334 = scalar_select %p333, %s23, 1
        %s335 = smul.addr %s334, 3
        %s336 = smul.addr %s335, 4
        %s337 = scalar_lea.vmem %s8, %s336
        %v338 = vld [vmem:[%s295] sm:$0xff]
        %v339 = vld [vmem:[%s295 + $0x8] sm:$0xff]
        %v340 = vld [vmem:[%s295 + $0x10] sm:$0xff]
        %v341 = vld [vmem:[%s295 + $0x18] sm:$0xff]
        %v342 = vld [vmem:[%s1] sm:$0xff]
        %344 = vset.pattern.permute.xlu0 0
        %345 = vperm.xlu0 %344, %v342
        %v346 = vpop.permute.xlu0 %345
        %v348 = vmul.f32 %v346, %v338
        %v349 = vmul.f32 %v346, %v339
        %v350 = vmul.f32 %v346, %v340
        %351 = vset.pattern.permute.xlu0 1
        %352 = vperm.xlu0 %351, %v342
        %v353 = vpop.permute.xlu0 %352
        %v355 = vmul.f32 %v353, %v338
        %v356 = vmul.f32 %v353, %v339
        %v357 = vmul.f32 %v353, %v340
        %v358 = vmul.f32 %v353, %v341
        %363 = vrot.lane.b32.xlu0 %v355, 127
        %v364 = vpop.permute.xlu0 %363
        %365 = vrot.lane.b32.xlu0 %v356, 127
        %v366 = vpop.permute.xlu0 %365
        %367 = vrot.lane.b32.xlu0 %v357, 127
        %v368 = vpop.permute.xlu0 %367
        %369 = vrot.lane.b32.xlu0 %v358, 127
        %v370 = vpop.permute.xlu0 %369
        %vm371 = vcmask 1039360
        %v372 = vsel %vm371, %v364, %v366
        %v373 = vsel %vm371, %v366, %v368
        %v374 = vsel %vm371, %v368, %v370
        %v378 = vadd.f32 %v348, %v372
        %v379 = vadd.f32 %v349, %v373
        %v380 = vadd.f32 %v350, %v374
        %381 = vset.pattern.permute.xlu0 2
        %382 = vperm.xlu0 %381, %v342
        %v383 = vpop.permute.xlu0 %382
        %v385 = vmul.f32 %v383, %v338
        %v386 = vmul.f32 %v383, %v339
        %v387 = vmul.f32 %v383, %v340
        %v388 = vmul.f32 %v383, %v341
        %393 = vrot.lane.b32.xlu0 %v385, 126
        %v394 = vpop.permute.xlu0 %393
        %395 = vrot.lane.b32.xlu0 %v386, 126
        %v396 = vpop.permute.xlu0 %395
        %397 = vrot.lane.b32.xlu0 %v387, 126
        %v398 = vpop.permute.xlu0 %397
        %399 = vrot.lane.b32.xlu0 %v388, 126
        %v400 = vpop.permute.xlu0 %399
        %vm401 = vcmask 1031168
        %v402 = vsel %vm401, %v394, %v396
        %v403 = vsel %vm401, %v396, %v398
        %v404 = vsel %vm401, %v398, %v400
        %v408 = vadd.f32 %v378, %v402
        %v409 = vadd.f32 %v379, %v403
        %v410 = vadd.f32 %v380, %v404
        %s411 = sld [smem:[#allocation5]]
        %vm412 = vcmp.ge.f32.partialorder %v408, 0.0
        %vm413 = vcmp.ge.f32.partialorder %v409, 0.0
        %vm414 = vcmp.ge.f32.partialorder %v410, 0.0
        %v415 = vstv %s411
        %v416 = vmul.f32 %v415, %v408
        %v417 = vmul.f32 %v415, %v409
        %v418 = vmul.f32 %v415, %v410
        %v419 = vsel %vm412, %v408, %v416
        %v420 = vsel %vm413, %v409, %v417
        %v421 = vsel %vm414, %v410, %v418
        %v422 = vlaneseq
        %v423 = vand.u32 %v422, 127
        %v424 = vadd.s32 %v423, 128
        %v425 = vadd.s32 %v423, 256
        %vm426 = vcmp.lt.s32.totalorder %v423, 298
        %vm427 = vcmp.lt.s32.totalorder %v424, 298
        %vm428 = vcmp.lt.s32.totalorder %v425, 298
        %v429 = vsel %vm426, 1, 0
        %v430 = vsel %vm427, 1, 0
        %v431 = vsel %vm428, 1, 0
        %vm432 = vcmp.eq.s32.totalorder %v429, 1
        %vm433 = vcmp.eq.s32.totalorder %v430, 1
        %vm434 = vcmp.eq.s32.totalorder %v431, 1
        %v435 = vsel %vm432, %v419, 0.0
        %v436 = vsel %vm433, %v420, 0.0
        %v437 = vsel %vm434, %v421, 0.0
        %v438 = vadd.f32 %v435, %v436
        %v439 = vadd.f32 %v438, %v437
        %440 = vadd.xlane.f32.xlu0 %v439
        %v441 = vpop.xlane.xlu0 %440
        %v442 = vrot.slane %v441, 4
        %v443 = vadd.f32 %v441, %v442
        %v444 = vrot.slane %v443, 2
        %v445 = vadd.f32 %v443, %v444
        %v446 = vrot.slane %v445, 1
        %v447 = vadd.f32 %v445, %v446
        %s448 = vtos %v447
        %v449 = vrcp.pop 2384.0
        %s450 = vtos %v449
        %s451 = smul.f32 %s448, %s450
        %v452 = vmul.f32 %v435, %v435
        %v453 = vmul.f32 %v436, %v436
        %v454 = vmul.f32 %v437, %v437
        %v455 = vadd.f32 %v452, %v453
        %v456 = vadd.f32 %v455, %v454
        %457 = vadd.xlane.f32.xlu0 %v456
        %v458 = vpop.xlane.xlu0 %457
        %v459 = vrot.slane %v458, 4
        %v460 = vadd.f32 %v458, %v459
        %v461 = vrot.slane %v460, 2
        %v462 = vadd.f32 %v460, %v461
        %v463 = vrot.slane %v462, 1
        %v464 = vadd.f32 %v462, %v463
        %s465 = vtos %v464
        %v466 = vrcp.pop 2384.0
        %s467 = vtos %v466
        %s468 = smul.f32 %s465, %s467
        %s469 = smul.f32 %s451, %s451
        %s470 = ssub.f32 %s468, %s469
        %s471 = smax.f32 %s470, 0.0
        %s472 = sadd.f32 %s471, 1e-09
        %v473 = vstv %s472
        %v474 = vrsqrt.pop %v473
        %s475 = vtos %v474
        %v476 = vstv %s451
        %v477 = vsub.f32 %v419, %v476
        %v478 = vsub.f32 %v420, %v476
        %v479 = vsub.f32 %v421, %v476
        %v480 = vld [vmem:[%s2] sm:$0xff]
        %v481 = vstv %s475
        %v482 = vmul.f32 %v480, %v481
        %484 = vset.pattern.permute.xlu0 0
        %485 = vperm.xlu0 %484, %v482
        %v486 = vpop.permute.xlu0 %485
        %v488 = vmul.f32 %v477, %v486
        %v489 = vmul.f32 %v478, %v486
        %v490 = vmul.f32 %v479, %v486
        %v491 = vld [vmem:[%s3] sm:$0xff]
        %493 = vset.pattern.permute.xlu0 0
        %494 = vperm.xlu0 %493, %v491
        %v495 = vpop.permute.xlu0 %494
        %v497 = vadd.f32 %v488, %v495
        %v498 = vadd.f32 %v489, %v495
        %v499 = vadd.f32 %v490, %v495
        %v500 = vld [vmem:[%s4] sm:$0x7]
        %vm501 = vcmask 64512
        %v503 = vsel %vm501, %v500, 0
        %505 = vmatprep.subr.mxu0 0.0
        %506 = vmatpush1.msra.mxu0 0.0
        %507 = vmatprep.subr.mxu0 0.0
        %508 = vmatpush1.msra.mxu0 0.0
        %509 = vmatprep.subr.mxu0 0.0
        %510 = vmatpush1.msra.mxu0 0.0
        %511 = vmatprep.subr.mxu0 0.0
        %512 = vmatpush1.msra.mxu0 0.0
        %513 = vmatprep.subr.mxu0 0.0
        %514 = vmatpush1.msra.mxu0 0.0
        %515 = vmatprep.subr.mxu0 0.0
        %516 = vmatpush1.msra.mxu0 0.0
        %517 = vmatprep.subr.mxu0 0.0
        %518 = vmatpush1.msra.mxu0 0.0
        %519 = vmatprep.subr.mxu0 0.0
        %520 = vmatpush1.msra.mxu0 0.0
        %521 = vmatprep.subr.mxu0 0.0
        %522 = vmatpush1.msra.mxu0 0.0
        %523 = vmatprep.subr.mxu0 0.0
        %524 = vmatpush1.msra.mxu0 0.0
        %525 = vmatprep.subr.mxu0 0.0
        %526 = vmatpush1.msra.mxu0 0.0
        %527 = vmatprep.subr.mxu0 0.0
        %528 = vmatpush1.msra.mxu0 0.0
        %529 = vmatprep.subr.mxu0 0.0
        %530 = vmatpush1.msra.mxu0 0.0
        %531 = vmatprep.subr.mxu0 0.0
        %532 = vmatpush1.msra.mxu0 0.0
        %533 = vmatprep.subr.mxu0 0.0
        %534 = vmatpush1.msra.mxu0 0.0
        %535 = vmatprep.subr.mxu0 %v498
        %536 = vmatpush1.msra.mxu0 %v497
        %537 = vmatprep.subr.mxu0 0.0
        %538 = vmatpush2.msra.mxu0 0.0
        %539 = vmatprep.subr.mxu0 0.0
        %540 = vmatpush2.msra.mxu0 0.0
        %541 = vmatprep.subr.mxu0 0.0
        %542 = vmatpush2.msra.mxu0 0.0
        %543 = vmatprep.subr.mxu0 0.0
        %544 = vmatpush2.msra.mxu0 0.0
        %545 = vmatprep.subr.mxu0 0.0
        %546 = vmatpush2.msra.mxu0 0.0
        %547 = vmatprep.subr.mxu0 0.0
        %548 = vmatpush2.msra.mxu0 0.0
        %549 = vmatprep.subr.mxu0 0.0
        %550 = vmatpush2.msra.mxu0 0.0
        %551 = vmatprep.subr.mxu0 0.0
        %552 = vmatpush2.msra.mxu0 0.0
        %553 = vmatprep.subr.mxu0 0.0
        %554 = vmatpush2.msra.mxu0 0.0
        %555 = vmatprep.subr.mxu0 0.0
        %556 = vmatpush2.msra.mxu0 0.0
        %557 = vmatprep.subr.mxu0 0.0
        %558 = vmatpush2.msra.mxu0 0.0
        %559 = vmatprep.subr.mxu0 0.0
        %560 = vmatpush2.msra.mxu0 0.0
        %561 = vmatprep.subr.mxu0 0.0
        %562 = vmatpush2.msra.mxu0 0.0
        %563 = vmatprep.subr.mxu0 0.0
        %564 = vmatpush2.msra.mxu0 0.0
        %565 = vmatprep.subr.mxu0 0.0
        %566 = vmatpush2.msra.mxu0 0.0
        %567 = vmatprep.subr.mxu0 0.0
        %568 = vmatpush2.msra.mxu0 0.0
        %569 = vmatprep.mubr.f32.mxu0 0.0
        %570 = vmatmul.mubr.f32.gmra.mxu0 %v503
        %v571 = vpop.f32.mrf.mxu0
        %v572 = vadd.f32 0.0, %v571
        %v573 = vpop.f32.mrf.mxu0
        %v574 = vadd.f32 0.0, %v573
        %575 = vdwg.mxu0
        %576 = vmatprep.subr.mxu0 0.0
        %577 = vmatpush1.msra.mxu0 0.0
        %578 = vmatprep.subr.mxu0 0.0
        %579 = vmatpush1.msra.mxu0 0.0
        %580 = vmatprep.subr.mxu0 0.0
        %581 = vmatpush1.msra.mxu0 0.0
        %582 = vmatprep.subr.mxu0 0.0
        %583 = vmatpush1.msra.mxu0 0.0
        %584 = vmatprep.subr.mxu0 0.0
        %585 = vmatpush1.msra.mxu0 0.0
        %586 = vmatprep.subr.mxu0 0.0
        %587 = vmatpush1.msra.mxu0 0.0
        %588 = vmatprep.subr.mxu0 0.0
        %589 = vmatpush1.msra.mxu0 0.0
        %590 = vmatprep.subr.mxu0 0.0
        %591 = vmatpush1.msra.mxu0 0.0
        %592 = vmatprep.subr.mxu0 0.0
        %593 = vmatpush1.msra.mxu0 0.0
        %594 = vmatprep.subr.mxu0 0.0
        %595 = vmatpush1.msra.mxu0 0.0
        %596 = vmatprep.subr.mxu0 0.0
        %597 = vmatpush1.msra.mxu0 0.0
        %598 = vmatprep.subr.mxu0 0.0
        %599 = vmatpush1.msra.mxu0 0.0
        %600 = vmatprep.subr.mxu0 0.0
        %601 = vmatpush1.msra.mxu0 0.0
        %602 = vmatprep.subr.mxu0 0.0
        %603 = vmatpush1.msra.mxu0 0.0
        %604 = vmatprep.subr.mxu0 0.0
        %605 = vmatpush1.msra.mxu0 0.0
        %606 = vmatprep.subr.mxu0 0.0
        %607 = vmatpush1.msra.mxu0 %v499
        %608 = vmatprep.subr.mxu0 0.0
        %609 = vmatpush2.msra.mxu0 0.0
        %610 = vmatprep.subr.mxu0 0.0
        %611 = vmatpush2.msra.mxu0 0.0
        %612 = vmatprep.subr.mxu0 0.0
        %613 = vmatpush2.msra.mxu0 0.0
        %614 = vmatprep.subr.mxu0 0.0
        %615 = vmatpush2.msra.mxu0 0.0
        %616 = vmatprep.subr.mxu0 0.0
        %617 = vmatpush2.msra.mxu0 0.0
        %618 = vmatprep.subr.mxu0 0.0
        %619 = vmatpush2.msra.mxu0 0.0
        %620 = vmatprep.subr.mxu0 0.0
        %621 = vmatpush2.msra.mxu0 0.0
        %622 = vmatprep.subr.mxu0 0.0
        %623 = vmatpush2.msra.mxu0 0.0
        %624 = vmatprep.subr.mxu0 0.0
        %625 = vmatpush2.msra.mxu0 0.0
        %626 = vmatprep.subr.mxu0 0.0
        %627 = vmatpush2.msra.mxu0 0.0
        %628 = vmatprep.subr.mxu0 0.0
        %629 = vmatpush2.msra.mxu0 0.0
        %630 = vmatprep.subr.mxu0 0.0
        %631 = vmatpush2.msra.mxu0 0.0
        %632 = vmatprep.subr.mxu0 0.0
        %633 = vmatpush2.msra.mxu0 0.0
        %634 = vmatprep.subr.mxu0 0.0
        %635 = vmatpush2.msra.mxu0 0.0
        %636 = vmatprep.subr.mxu0 0.0
        %637 = vmatpush2.msra.mxu0 0.0
        %638 = vmatprep.subr.mxu0 0.0
        %639 = vmatpush2.msra.mxu0 0.0
        %640 = vmatprep.mubr.f32.mxu0 0.0
        %641 = vmatmul.mubr.f32.gmra.mxu0 %v503
        %v642 = vpop.f32.mrf.mxu0
        %v643 = vadd.f32 0.0, %v642
        %v644 = vpop.f32.mrf.mxu0
        %645 = vdwg.mxu0
        %s646 = sld [smem:[#allocation5 + $0x1]]
        %vm647 = vcmp.ge.f32.partialorder %v572, 0.0
        %vm648 = vcmp.ge.f32.partialorder %v574, 0.0
        %vm649 = vcmp.ge.f32.partialorder %v643, 0.0
        %v650 = vstv %s646
        %v651 = vmul.f32 %v650, %v572
        %v652 = vmul.f32 %v650, %v574
        %v653 = vmul.f32 %v650, %v643
        %v654 = vsel %vm647, %v572, %v651
        %v655 = vsel %vm648, %v574, %v652
        %v656 = vsel %vm649, %v643, %v653
        %v657 = vsel %vm432, %v654, 0.0
        %v658 = vsel %vm433, %v655, 0.0
        %v659 = vsel %vm434, %v656, 0.0
        %vm660 = vcmask 1042432
        %v661 = vsel %vm660, %v657, 0.0
        %v662 = vsel %vm660, %v658, 0.0
        %v663 = vadd.f32 %v661, %v662
        %v664 = vsel %vm660, %v659, 0.0
        %v665 = vadd.f32 %v663, %v664
        %666 = vadd.xlane.f32.xlu0 %v665
        %v667 = vpop.xlane.xlu0 %666
        %v668 = vrot.slane %v667, 4
        %v669 = vadd.f32 %v667, %v668
        %v670 = vrot.slane %v669, 2
        %v671 = vadd.f32 %v669, %v670
        %v672 = vrot.slane %v671, 1
        %v673 = vadd.f32 %v671, %v672
        %s674 = vtos %v673
        %v675 = vrcp.pop 894.0
        %s676 = vtos %v675
        %s677 = smul.f32 %s674, %s676
        %v678 = vmul.f32 %v657, %v657
        %v679 = vmul.f32 %v658, %v658
        %v680 = vmul.f32 %v659, %v659
        %v681 = vsel %vm660, %v678, 0.0
        %v682 = vsel %vm660, %v679, 0.0
        %v683 = vadd.f32 %v681, %v682
        %v684 = vsel %vm660, %v680, 0.0
        %v685 = vadd.f32 %v683, %v684
        %686 = vadd.xlane.f32.xlu0 %v685
        %v687 = vpop.xlane.xlu0 %686
        %v688 = vrot.slane %v687, 4
        %v689 = vadd.f32 %v687, %v688
        %v690 = vrot.slane %v689, 2
        %v691 = vadd.f32 %v689, %v690
        %v692 = vrot.slane %v691, 1
        %v693 = vadd.f32 %v691, %v692
        %s694 = vtos %v693
        %v695 = vrcp.pop 894.0
        %s696 = vtos %v695
        %s697 = smul.f32 %s694, %s696
        %s698 = smul.f32 %s677, %s677
        %s699 = ssub.f32 %s697, %s698
        %s700 = smax.f32 %s699, 0.0
        %s701 = sadd.f32 %s700, 1e-09
        %v702 = vstv %s701
        %v703 = vrsqrt.pop %v702
        %s704 = vtos %v703
        %v705 = vstv %s677
        %v706 = vsub.f32 %v654, %v705
        %v707 = vsub.f32 %v655, %v705
        %v708 = vsub.f32 %v656, %v705
        %v709 = vld [vmem:[%s5] sm:$0x7]
        %v710 = vstv %s704
        %v711 = vmul.f32 %v709, %v710
        %713 = vset.pattern.permute.xlu0 0
        %714 = vperm.xlu0 %713, %v711
        %v715 = vpop.permute.xlu0 %714
        %v717 = vmul.f32 %v706, %v715
        %v718 = vmul.f32 %v707, %v715
        %v719 = vmul.f32 %v708, %v715
        %v720 = vld [vmem:[%s6] sm:$0x7]
        %722 = vset.pattern.permute.xlu0 0
        %723 = vperm.xlu0 %722, %v720
        %v724 = vpop.permute.xlu0 %723
        %v726 = vadd.f32 %v717, %v724
        %v727 = vadd.f32 %v718, %v724
        %v728 = vadd.f32 %v719, %v724
        %v729 = vmax.f32 %v726, 0.0
        %v730 = vmax.f32 %v727, 0.0
        %v731 = vmax.f32 %v728, 0.0
        %v732 = vmin.f32 %v729, 2.0
        %v733 = vmin.f32 %v730, 2.0
        %v734 = vmin.f32 %v731, 2.0
        %v737 = vcombine.low %v732, %v733
        %739 = vst [vmem:[%s337] sm:$0x77] %v737
        %740 = vst [vmem:[%s337 + $0x8] sm:$0x7] %v734
        %p741 = scmp.lt.s32.totalorder %s23, 1
        %s742 = scalar_select %p741, %s23, 1
        %s743 = smul.addr %s742, 3
        %s744 = smul.addr %s743, 4
        %s745 = scalar_lea.vmem %s8, %s744
        // Predicated region
        $region61: #{tpu_custom_call.1} parent=51 // pred_check
          %p746 = pneg %p214
        $region62: #{tpu_custom_call.1} parent=51 // pred_check_branch
          %748 = sbr.rel (%p746) target = $region64
        $region63: #{tpu_custom_call.1} parent=51 // pred_region
          _
        $region64: #{tpu_custom_call.1} parent=51 // pred_fallthru
          _
      $region52: #{tpu_custom_call.1} parent=5 // pred_fallthru
        _
      %p749 = scmp.le.s32.totalorder 2, %s18
      // Predicated region
      $region65: #{tpu_custom_call.1} parent=5 // pred_check
        %p750 = pneg %p749
      $region66: #{tpu_custom_call.1} parent=5 // pred_check_branch
        %752 = sbr.rel (%p750) target = $region68
      $region67: #{tpu_custom_call.1} parent=5 // pred_region
        %s753 = ssub.s32 %s18, 2
        // Predicated region
        $region69: #{tpu_custom_call.1} parent=67 // pred_check
          %p754 = pneg %p220
        $region70: #{tpu_custom_call.1} parent=67 // pred_check_branch
          %756 = sbr.rel (%p754) target = $region72
        $region71: #{tpu_custom_call.1} parent=67 // pred_region
          %p757 = scmp.lt.s32.totalorder %s24, 1
          %s758 = scalar_select %p757, %s24, 1
          %s759 = smul.addr %s758, 3
          %s760 = smul.addr %s759, 4
          %s761 = scalar_lea.vmem %s8, %s760
        $region72: #{tpu_custom_call.1} parent=67 // pred_fallthru
          _
      $region68: #{tpu_custom_call.1} parent=5 // pred_fallthru
        _
    $region6: #{tpu_custom_call.1} parent=1 // loop_footer
      %s22 = sadd.s32 1, %s18
    $region7: #{tpu_custom_call.1} parent=1 // loop_footer_branch
      %17 = sbr.rel target = $region3
    $region8: #{tpu_custom_call.1} parent=1 // loop_exit
      _
    %762 = vsyncpa [#allocation3], 1
    %s763 = scalar_lea.sflag [#allocation3], 1
    %764 = vsyncpa %s763, 1
    %765 = vsyncpa [#allocation4], 1
    %s766 = scalar_lea.sflag [#allocation4], 1
    %767 = vsyncpa %s766, 1

</llo_original>
